<compile_context>
chip_gen: v5e
topology: v5e:2x2
jax: 0.10.0
libtpu: 0.0.40
codegen_flags: <defaults>
</compile_context>

<pallas_src>
import functools

import jax
import jax.numpy as jnp
import numpy as np
from jax.experimental import pallas as pl
from jax.experimental.pallas import tpu as pltpu

EPS = 1e-5  # PyTorch InstanceNorm2d default eps (affine=False by default)

_ROLL_MATCHES_JNP = None


def _roll_matches_jnp() -> bool:
    """Probe pltpu.roll's rotation direction once (cached tiny kernel).

    The main kernel only relies on "out[:, l] = h[:, (l + off) % L]" semantics;
    this probe determines which sign of `shift` realizes that, so the
    reflection-padded tap generation is correct under either convention.
    Must be called outside jit (inputs/outputs are concrete).
    """
    global _ROLL_MATCHES_JNP
    if _ROLL_MATCHES_JNP is None:
        def probe(x_ref, o_ref):
            o_ref[...] = pltpu.roll(x_ref[...], shift=1, axis=1)

        x = jnp.tile(jnp.arange(256, dtype=jnp.float32)[None, :], (8, 1))
        y = np.asarray(
            pl.pallas_call(probe,
                           out_shape=jax.ShapeDtypeStruct((8, 256), jnp.float32))(x))
        xr = np.asarray(x)
        if np.array_equal(y, np.roll(xr, 1, axis=1)):
            _ROLL_MATCHES_JNP = True
        elif np.array_equal(y, np.roll(xr, -1, axis=1)):
            _ROLL_MATCHES_JNP = False
        else:
            raise RuntimeError("unexpected pltpu.roll probe result")
    return _ROLL_MATCHES_JNP


def residual_block_kernel(x_ref, ids_ref, w1_ref, w2_ref, o_ref, *,
                          H, W, mm_dtype, fuse_taps, roll_like_jnp):
    x = x_ref[0]                       # (C, L) f32, channels-first, lane-dense
    C, L = x.shape

    def neighbor(h, off):
        # out[:, l] = h[:, (l + off) % L]  (wrap-around; borders fixed below)
        s = (-off) % L if roll_like_jnp else off % L
        return pltpu.roll(h, shift=s, axis=1) if s else h

    # Border masks, built once from the precomputed (row, col) index table and
    # pre-broadcast to (C, L) so each jnp.where below reuses the same vregs.
    row = ids_ref[0:1, :]
    col = ids_ref[1:2, :]
    first_row = jnp.broadcast_to(row == 0, (C, L))
    last_row = jnp.broadcast_to(row == H - 1, (C, L))
    first_col = jnp.broadcast_to(col == 0, (C, L))
    last_col = jnp.broadcast_to(col == W - 1, (C, L))

    def taps_of(h):
        # Nine reflection-padded 3x3 taps of h (f32), tap index t = dy*3 + dx.
        up, down = neighbor(h, -W), neighbor(h, W)          # rows i-1 / i+1
        rows = (jnp.where(first_row, down, up),              # dy=0: reflect -1 -> 1
                h,                                            # dy=1
                jnp.where(last_row, up, down))                # dy=2: reflect H -> H-2
        taps = []
        for rv in rows:
            left, right = neighbor(rv, -1), neighbor(rv, 1)   # cols j-1 / j+1
            taps.append(jnp.where(first_col, right, left))    # dx=0: reflect -1 -> 1
            taps.append(rv)                                    # dx=1
            taps.append(jnp.where(last_col, left, right))     # dx=2: reflect W -> W-2
        return taps

    def conv3x3(h, w_ref):
        taps = taps_of(h)
        if fuse_taps:
            # Single K = 9*C matmul; one cast to the MXU dtype per conv.
            patches = jnp.concatenate(taps, axis=0).astype(mm_dtype)   # (9C, L)
            return jnp.dot(w_ref[...], patches,
                           preferred_element_type=jnp.float32)
        # Large-C path: nine accumulating tap matmuls, acc seeded by tap 0.
        acc = jnp.dot(w_ref[0], taps[0].astype(mm_dtype),
                      preferred_element_type=jnp.float32)
        for t in range(1, 9):
            acc = acc + jnp.dot(w_ref[t], taps[t].astype(mm_dtype),
                                preferred_element_type=jnp.float32)
        return acc

    def instance_norm(y):
        # Per-channel stats over the spatial (lane) axis; f32, centered variance.
        inv_l = jnp.float32(1.0 / L)
        m = jnp.sum(y, axis=1, keepdims=True) * inv_l
        d = y - m
        var = jnp.sum(d * d, axis=1, keepdims=True) * inv_l
        return d * jax.lax.rsqrt(var + EPS)

    y = jnp.maximum(instance_norm(conv3x3(x, w1_ref)), 0.0)   # conv1 + IN + ReLU
    y = instance_norm(conv3x3(y, w2_ref))                     # conv2 + IN
    o_ref[0] = x + y                                          # residual add


def residual_block(x_nchw, w1, b1, w2, b2, *, matmul_dtype=jnp.bfloat16,
                   vmem_limit_bytes=32 * 1024 * 1024):
    """x_nchw: (N,C,H,W) f32; w*: (C,C,3,3) OIHW; b*: (C,) (accepted, unused).

    Biases are exact no-ops here: InstanceNorm2d(affine=False) follows each
    conv, so the mean subtraction removes any per-channel constant exactly.
    """
    del b1, b2
    N, C, H, W = x_nchw.shape
    assert H >= 2 and W >= 2, "reflection padding of 1 requires H, W >= 2"
    assert w1.shape == (C, C, 3, 3) and w2.shape == (C, C, 3, 3)
    L = H * W
    fuse_taps = C <= 128

    x = x_nchw.reshape(N, C, L).astype(jnp.float32)   # free reshape, no transpose

    if fuse_taps:
        # OIHW -> (C_out, 9*C_in); K index = (dy*3+dx)*C + c_in (matches the
        # in-kernel tap concatenation order).
        w1k = jnp.transpose(w1, (0, 2, 3, 1)).reshape(C, 9 * C).astype(matmul_dtype)
        w2k = jnp.transpose(w2, (0, 2, 3, 1)).reshape(C, 9 * C).astype(matmul_dtype)
    else:
        # OIHW -> (tap, C_out, C_in), tap = dy*3 + dx.
        w1k = jnp.transpose(w1, (2, 3, 0, 1)).reshape(9, C, C).astype(matmul_dtype)
        w2k = jnp.transpose(w2, (2, 3, 0, 1)).reshape(9, C, C).astype(matmul_dtype)

    # Spatial (row, col) index table -> border masks in-kernel without any
    # vector integer div/mod on the VPU.
    l_iota = np.arange(L, dtype=np.int32)
    ids = jnp.asarray(np.stack([l_iota // W, l_iota % W], axis=0))   # (2, L) int32

    kernel = functools.partial(
        residual_block_kernel, H=H, W=W, mm_dtype=matmul_dtype,
        fuse_taps=fuse_taps, roll_like_jnp=_roll_matches_jnp())

    out = pl.pallas_call(
        kernel,
        out_shape=jax.ShapeDtypeStruct((N, C, L), jnp.float32),
        grid_spec=pltpu.PrefetchScalarGridSpec(
            num_scalar_prefetch=0,
            grid=(N,),
            in_specs=[
                pl.BlockSpec((1, C, L), lambda n: (n, 0, 0)),
                # Whole-array VMEM residents: constant across the grid, so no
                # double-buffered second copy is allocated.
                pl.BlockSpec(memory_space=pltpu.MemorySpace.VMEM),
                pl.BlockSpec(memory_space=pltpu.MemorySpace.VMEM),
                pl.BlockSpec(memory_space=pltpu.MemorySpace.VMEM),
            ],
            out_specs=pl.BlockSpec((1, C, L), lambda n: (n, 0, 0)),
        ),
        compiler_params=pltpu.CompilerParams(
            dimension_semantics=("parallel",),
            # Plenty at this scale; raise (~96 MiB) on v5e/v6e for CycleGAN-size
            # maps -- v7x needs the tiled variant instead (see TODO above).
            vmem_limit_bytes=vmem_limit_bytes,
        ),
    )(x, ids, w1k, w2k)
    return out.reshape(N, C, H, W)


def _reference(x, w1, b1, w2, b2):
    # Pure-JAX NCHW reference mirroring the PyTorch module (biases included).
    def conv(h, w, b):
        hp = jnp.pad(h, ((0, 0), (0, 0), (1, 1), (1, 1)), mode="reflect")
        y = jax.lax.conv_general_dilated(
            hp, w, (1, 1), "VALID",
            dimension_numbers=("NCHW", "OIHW", "NCHW"))
        return y + b[None, :, None, None]

    def inorm(y):
        m = jnp.mean(y, axis=(2, 3), keepdims=True)
        v = jnp.mean(jnp.square(y - m), axis=(2, 3), keepdims=True)
        return (y - m) * jax.lax.rsqrt(v + EPS)

    h = jax.nn.relu(inorm(conv(x, w1, b1)))
    h = inorm(conv(h, w2, b2))
    return x + h


if __name__ == "__main__":
    key = jax.random.PRNGKey(0)
    N, C, H, W = 2, 8, 16, 16
    k1, k2, k3, k4, k5 = jax.random.split(key, 5)

    x = jax.random.normal(k1, (N, C, H, W), jnp.float32)
    # Deterministic synthetic init (Conv2d-like uniform fan-in bound)
    bound = 1.0 / np.sqrt(C * 3 * 3)
    w1 = jax.random.uniform(k2, (C, C, 3, 3), jnp.float32, -bound, bound)
    b1 = jax.random.uniform(k3, (C,), jnp.float32, -bound, bound)
    w2 = jax.random.uniform(k4, (C, C, 3, 3), jnp.float32, -bound, bound)
    b2 = jax.random.uniform(k5, (C,), jnp.float32, -bound, bound)

    ref = _reference(x, w1, b1, w2, b2)

    # Strict check on the f32 MXU path (identical kernel code path, exact math).
    out_f32 = jax.block_until_ready(
        residual_block(x, w1, b1, w2, b2, matmul_dtype=jnp.float32))
    np.testing.assert_allclose(np.asarray(out_f32), np.asarray(ref),
                               rtol=1e-4, atol=1e-4)

    # Default path (bf16 MXU operands, f32 accumulation / norm / residual):
    # smoke-level tolerance -- structure is already pinned by the f32 check.
    out_bf16 = jax.block_until_ready(residual_block(x, w1, b1, w2, b2))
    np.testing.assert_allclose(np.asarray(out_bf16), np.asarray(ref),
                               rtol=0.0, atol=0.5)

    print("KERNEL_OK")
</pallas_src>

<mosaic_0001>
module attributes {stable_mosaic.version = 11 : i64} {
  func.func @probe(%arg0: memref<8x256xf32, #tpu.memory_space<vmem>>, %arg1: memref<8x256xf32, #tpu.memory_space<vmem>>) attributes {dimension_semantics = [], scalar_prefetch = 0 : i64, scratch_operands = 0 : i64, tpu.core_type = #tpu.core_type<tc>} {
    %c0 = arith.constant 0 : index
    %c0_0 = arith.constant 0 : index
    %0 = vector.load %arg0[%c0, %c0_0] : memref<8x256xf32, #tpu.memory_space<vmem>>, vector<8x256xf32>
    %c1_i32 = arith.constant 1 : i32
    %1 = tpu.dynamic_rotate %0 by %c1_i32 dim 1 : vector<8x256xf32>, i32 -> vector<8x256xf32>
    %c0_1 = arith.constant 0 : index
    %c0_2 = arith.constant 0 : index
    %2 = vector.load %arg1[%c0_1, %c0_2] : memref<8x256xf32, #tpu.memory_space<vmem>>, vector<8x256xf32>
    tpu.vector_store %arg1[%c0_1, %c0_2], %1 {strides = array<i32>} : memref<8x256xf32, #tpu.memory_space<vmem>>, vector<8x256xf32>,
    return
  }
}

</mosaic_0001>

<llo_original>
// kernel: tpu_custom_call.1
$region0: #{tpu_custom_call.1}
  #allocation0 [shape = 'u32[]', space=smem, size = 0x4, offset = 0x4, fixed_abs, tag = 'smem constant byte address 0x4 - core index']
  #allocation1 [shape = 'u32[72,128]{1,0:T(1,128)}', space=vmem, size = 0x9000, scoped, tag = 'internal scratch']
  %s0 = inlined_call_operand.hbm [shape: f32[8,256], index: 0, kind: input, shape index: {}]
  %s1 = inlined_call_operand.hbm [shape: f32[8,256], index: 1, kind: output, shape index: {}]
  %s2 = sld [smem:[#allocation0]]
  $region18: #{tpu_custom_call.1} parent=0
    _
  %s4 = ssub.s32 1, %s2
  %s5 = scalar_select 0, %s4, %s2
  $region1: #{tpu_custom_call.1} parent=0
    #allocation2 [shape = 'u8[8192]{0}', space=vmem, size = 0x2000, scoped, tag = 'input window, operand 0, single buffered']
    #allocation3 [shape = 's32[1]{0}', space=sflag, size = 0x4, scoped, tag = 'scoped memory for tpu_custom_call.1']
    #allocation4 [shape = 's32[1]{0}', space=sflag, size = 0x4, scoped, tag = 'scoped memory for tpu_custom_call.1']
    #allocation5 [shape = 'u8[8192]{0}', space=vmem, size = 0x2000, scoped, tag = 'output window, operand 0, single buffered']
    %6 = vsyncpa [#allocation3], 0
    %7 = vsyncpa [#allocation4], 0
    // Predicated region
    $region2: #{tpu_custom_call.1} parent=1 // pred_check
      _
    $region3: #{tpu_custom_call.1} parent=1 // pred_check_branch
      %9 = sbr.rel (0) target = $region5
    $region4: #{tpu_custom_call.1} parent=1 // pred_region
      %11 = vsyncadd [#allocation3], 0
      %s13 = sshll.u32 %s0, 4
      %s14 = int_to_ptr.hbm [resolvable:$true] %s13
      %s15 = sshll.u32 [#allocation2], 4
      %s16 = int_to_ptr.vmem [resolvable:$true] %s15
      %18 = dma.hbm_to_vmem [thread:$0]  %s14, 256, %s16, [#allocation3]
    $region5: #{tpu_custom_call.1} parent=1 // pred_fallthru
      _
    // Predicated region
    $region6: #{tpu_custom_call.1} parent=1 // pred_check
      _
    $region7: #{tpu_custom_call.1} parent=1 // pred_check_branch
      %20 = sbr.rel (0) target = $region9
    $region8: #{tpu_custom_call.1} parent=1 // pred_region
      %22 = dma.done [#allocation3], 256
    $region9: #{tpu_custom_call.1} parent=1 // pred_fallthru
      _
    %v23 = vld [vmem:[#allocation2] sm:$0xff]
    %v24 = vld [vmem:[#allocation2 + $0x8] sm:$0xff]
    %25 = vrot.lane.b32.xlu0 %v23, 1
    %v26 = vpop.permute.xlu0 %25
    %27 = vrot.lane.b32.xlu0 %v24, 1
    %v28 = vpop.permute.xlu0 %27
    %v29 = vlaneseq
    %v30 = vand.u32 %v29, 127
    %vm31 = vcmp.lt.s32.totalorder %v30, 1
    %v32 = vsel %vm31, %v26, %v28
    %v33 = vsel %vm31, %v28, %v26
    %34 = vst [vmem:[#allocation5] sm:$0xff] %v33
    %35 = vst [vmem:[#allocation5 + $0x8] sm:$0xff] %v32
    // Predicated region
    $region10: #{tpu_custom_call.1} parent=1 // pred_check
      _
    $region11: #{tpu_custom_call.1} parent=1 // pred_check_branch
      %37 = sbr.rel (0) target = $region13
    $region12: #{tpu_custom_call.1} parent=1 // pred_region
      %39 = vsyncadd [#allocation4], 0
      %s41 = sshll.u32 [#allocation5], 4
      %s42 = int_to_ptr.vmem [resolvable:$true] %s41
      %s43 = sshll.u32 %s1, 4
      %s44 = int_to_ptr.hbm [resolvable:$true] %s43
      %46 = dma.vmem_to_hbm [thread:$0]  %s42, 256, %s44, [#allocation4]
    $region13: #{tpu_custom_call.1} parent=1 // pred_fallthru
      _
    // Predicated region
    $region14: #{tpu_custom_call.1} parent=1 // pred_check
      _
    $region15: #{tpu_custom_call.1} parent=1 // pred_check_branch
      %48 = sbr.rel (0) target = $region17
    $region16: #{tpu_custom_call.1} parent=1 // pred_region
      %50 = dma.done [#allocation4], 256
    $region17: #{tpu_custom_call.1} parent=1 // pred_fallthru
      _
    %51 = vsyncpa [#allocation3], 1
    %52 = vsyncpa [#allocation4], 1

</llo_original>
